<compile_context>
chip_gen: v7x
topology: tpu7x:2x2x1
jax: 0.10.0
libtpu: 0.0.40
codegen_flags: <defaults>
</compile_context>

<pallas_src>
import functools

import jax
import jax.numpy as jnp
from jax.experimental import pallas as pl
from jax.experimental.pallas import tpu as pltpu


def _round_up(x: int, m: int) -> int:
    return ((x + m - 1) // m) * m


# ----------------------------------------------------------------------------
# Kernel: fused (x @ w) + activation epilogue
# ----------------------------------------------------------------------------
def _layer_zinb_kernel(x_ref, w_ref, o_ref, *, act_type: str, compute_dtype):
    # Cast operands to the MXU-native dtype (bf16 by default): an f32 x f32
    # matmul is emulated as ~3 bf16 MXU passes on v5e/v6e/v7x.  Accumulation
    # stays f32 via preferred_element_type.
    x = x_ref[...].astype(compute_dtype)
    w = w_ref[...].astype(compute_dtype)
    h = jnp.dot(x, w, preferred_element_type=jnp.float32)
    if act_type == "sigmoid":
        out = jax.nn.sigmoid(h)                          # EUP exp + recip
    elif act_type == "MeanAct":
        out = jnp.clip(jnp.exp(h), 1e-5, 1e6)            # EUP exp, VPU clip
    elif act_type == "DispAct":
        # Overflow-safe softplus, matching torch.nn.Softplus numerics.
        out = jnp.clip(jax.nn.softplus(h), 1e-4, 1e4)
    else:
        # PyTorch module returns the raw pre-activation for any other `type`.
        out = h
    o_ref[...] = out.astype(o_ref.dtype)


# ----------------------------------------------------------------------------
# Tile selection (VMEM-budgeted, lane-dense, >=2 grid steps when possible)
# ----------------------------------------------------------------------------
def _choose_tiles(M, K, N, x_itemsize, w_itemsize, out_itemsize,
                  tile_budget_bytes=32 << 20):
    # --- column (lane) tile ---------------------------------------------------
    if N % 128 != 0:
        # Full-width block (== array dim) keeps the BlockSpec legal; stores are
        # masked vst.msk.  TODO(synk): pad w's columns to a 128 multiple for
        # fully lane-dense stores when out_feature is not a multiple of 128.
        tn = N
    else:
        tn = N
        # Bound the (double-buffered) per-tile weight slab so large K*N still
        # fits comfortably in v7x's 64 MiB VMEM; keep tiles >= 256 lanes wide.
        while (tn > 256 and (tn // 2) % 128 == 0
               and K * tn * w_itemsize > (8 << 20)):
            tn //= 2

    # --- row (sublane) tile ---------------------------------------------------
    m8 = _round_up(max(M, 1), 8)
    tm = min(1024, m8)

    def tile_bytes(tm_, tn_):
        return (2 * tm_ * K * x_itemsize        # x input tile, double-buffered
                + 2 * K * tn_ * w_itemsize      # w input tile, double-buffered
                + 2 * tm_ * tn_ * out_itemsize)  # output tile, double-buffered

    while tm > 8 and tile_bytes(tm, tn) > tile_budget_bytes:
        tm = max(8, _round_up(tm // 2, 8))

    # --- give v7x's two TensorCores work (harmless on single-TC v5e/v6e) -----
    if pl.cdiv(M, tm) * pl.cdiv(N, tn) < 2:
        if tn % 256 == 0:                 # split N: also splits the weight DMA
            tn //= 2
        elif M >= 16:                     # otherwise split the batch tile
            tm = _round_up(pl.cdiv(M, 2), 8)

    return tm, tn, tile_bytes(tm, tn)


# ----------------------------------------------------------------------------
# Wrapper
# ----------------------------------------------------------------------------
def layer_zinb_forward(x, w, act_type: str, *, compute_dtype=jnp.bfloat16):
    """h = x @ w followed by the activation selected by `act_type`."""
    x = jnp.asarray(x)          # no forced f32 upcast (accepts bf16 directly)
    w = jnp.asarray(w)
    M, K = x.shape
    K2, N = w.shape
    assert K == K2, (K, K2)

    out_dtype = jnp.float32
    tm, tn, working_set = _choose_tiles(
        M, K, N, x.dtype.itemsize, w.dtype.itemsize,
        jnp.dtype(out_dtype).itemsize)
    grid = (pl.cdiv(M, tm), pl.cdiv(N, tn))   # ragged last blocks handled by Pallas

    vmem_limit = min(128 << 20, max(32 << 20, working_set + (8 << 20)))

    kernel = functools.partial(
        _layer_zinb_kernel, act_type=act_type, compute_dtype=compute_dtype)

    cost = pl.CostEstimate(
        flops=2 * M * K * N,
        transcendentals=(M * N) if act_type in ("sigmoid", "MeanAct", "DispAct") else 0,
        bytes_accessed=(M * K * x.dtype.itemsize
                        + K * N * w.dtype.itemsize
                        + M * N * jnp.dtype(out_dtype).itemsize),
    )

    return pl.pallas_call(
        kernel,
        out_shape=jax.ShapeDtypeStruct((M, N), out_dtype),
        grid=grid,
        in_specs=[
            # Activations: tiled over batch, constant over the N axis (Pallas
            # skips the re-fetch for repeated block indices).
            pl.BlockSpec((tm, K), lambda i, j: (i, 0)),
            # Weight: full-K column slab; N-tiled only when K*N is large.
            pl.BlockSpec((K, tn), lambda i, j: (0, j)),
        ],
        out_specs=pl.BlockSpec((tm, tn), lambda i, j: (i, j)),
        compiler_params=pltpu.CompilerParams(
            dimension_semantics=("parallel", "parallel"),
            vmem_limit_bytes=int(vmem_limit),
        ),
        cost_estimate=cost,
    )(x, w)


# ----------------------------------------------------------------------------
# Parameter construction (matches nn.init.xavier_uniform_(gain=1));
# bf16 storage halves the K*N weight HBM stream into the kernel.
# ----------------------------------------------------------------------------
def init_layer_zinb_params(key, in_feature, out_feature, param_dtype=jnp.bfloat16):
    limit = (6.0 / (in_feature + out_feature)) ** 0.5
    w = jax.random.uniform(key, (in_feature, out_feature), jnp.float32, -limit, limit)
    return w.astype(param_dtype)


def _reference(x, w, act_type, compute_dtype=jnp.bfloat16):
    """Pure-JAX reference with the same compute dtype as the kernel."""
    h = jnp.dot(x.astype(compute_dtype), w.astype(compute_dtype),
                preferred_element_type=jnp.float32)
    if act_type == "sigmoid":
        return jax.nn.sigmoid(h)
    if act_type == "MeanAct":
        return jnp.clip(jnp.exp(h), 1e-5, 1e6)
    if act_type == "DispAct":
        return jnp.clip(jax.nn.softplus(h), 1e-4, 1e4)
    return h


# ----------------------------------------------------------------------------
if __name__ == "__main__":
    # layer_zinb(in_feature=64, out_feature=256); small batch.
    batch, in_feature, out_feature = 8, 64, 256

    key = jax.random.PRNGKey(0)
    k_w, k_x, k_x2, k_w3 = jax.random.split(key, 4)
    w = init_layer_zinb_params(k_w, in_feature, out_feature)        # bf16 weight
    x = jax.random.normal(k_x, (batch, in_feature), jnp.float32)

    for act_type in ("sigmoid", "MeanAct", "DispAct", "linear"):
        out = layer_zinb_forward(x, w, act_type)
        jax.block_until_ready(out)
        assert out.shape == (batch, out_feature)
        ref = _reference(x, w, act_type)
        assert bool(jnp.allclose(out, ref, rtol=1e-3, atol=1e-5)), act_type

    # Range sanity implied by the module's activations.
    pi = layer_zinb_forward(x, w, "sigmoid")
    disp = layer_zinb_forward(x, w, "DispAct")
    mean = layer_zinb_forward(x, w, "MeanAct")
    jax.block_until_ready((pi, disp, mean))
    assert bool(jnp.all((pi >= 0.0) & (pi <= 1.0)))
    assert bool(jnp.all((disp >= 1e-4) & (disp <= 1e4)))
    assert bool(jnp.all((mean >= 1e-5) & (mean <= 1e6)))

    # Ragged batch (not a multiple of 8): handled by Pallas, no wrapper pad/slice.
    x2 = jax.random.normal(k_x2, (10, in_feature), jnp.float32)
    out2 = layer_zinb_forward(x2, w, "MeanAct")
    jax.block_until_ready(out2)
    assert out2.shape == (10, out_feature)
    assert bool(jnp.allclose(out2, _reference(x2, w, "MeanAct"),
                             rtol=1e-3, atol=1e-5))

    # Single-step-per-axis path (out_feature == 128) and bf16 activations input.
    w3 = init_layer_zinb_params(k_w3, in_feature, 128)
    x3 = x.astype(jnp.bfloat16)
    out3 = layer_zinb_forward(x3, w3, "DispAct")
    jax.block_until_ready(out3)
    assert out3.shape == (batch, 128)
    assert bool(jnp.allclose(out3, _reference(x3, w3, "DispAct"),
                             rtol=1e-3, atol=1e-5))

    print("KERNEL_OK")
</pallas_src>

<mosaic_0001>
module attributes {stable_mosaic.version = 11 : i64} {
  func.func @_layer_zinb_kernel(%arg0: i32, %arg1: i32, %arg2: memref<8x64xf32, #tpu.memory_space<vmem>>, %arg3: memref<64x128xbf16, #tpu.memory_space<vmem>>, %arg4: memref<8x128xf32, #tpu.memory_space<vmem>>) attributes {dimension_semantics = [#tpu.dimension_semantics<parallel>, #tpu.dimension_semantics<parallel>], iteration_bounds = array<i64: 1, 2>, scalar_prefetch = 0 : i64, scratch_operands = 0 : i64, tpu.core_type = #tpu.core_type<tc>, window_params = [{transform_indices = @transform_0, window_bounds = array<i64: 8, 64>}, {transform_indices = @transform_1, window_bounds = array<i64: 64, 128>}, {transform_indices = @transform_2, window_bounds = array<i64: 8, 128>}]} {
    %c0 = arith.constant 0 : index
    %c0_0 = arith.constant 0 : index
    %0 = vector.load %arg2[%c0, %c0_0] : memref<8x64xf32, #tpu.memory_space<vmem>>, vector<8x64xf32>
    %1 = arith.truncf %0 : vector<8x64xf32> to vector<8x64xbf16>
    %c0_1 = arith.constant 0 : index
    %c0_2 = arith.constant 0 : index
    %2 = vector.load %arg3[%c0_1, %c0_2] : memref<64x128xbf16, #tpu.memory_space<vmem>>, vector<64x128xbf16>
    %cst = arith.constant dense<0.000000e+00> : vector<8x128xf32>
    %3 = tpu.matmul %1, %2, %cst {dimension_numbers = #tpu.dot_dimension_numbers<[1], [0], [0], [1], [0, 0, 1, 1], [], []>} : vector<8x64xbf16>, vector<64x128xbf16>, vector<8x128xf32> -> vector<8x128xf32>
    %4 = arith.negf %3 : vector<8x128xf32>
    %5 = math.exp %4 : vector<8x128xf32>
    %cst_3 = arith.constant 1.000000e+00 : f32
    %6 = vector.broadcast %cst_3 : f32 to vector<8x128xf32>
    %7 = arith.addf %6, %5 : vector<8x128xf32>
    %8 = arith.divf %6, %7 : vector<8x128xf32>
    %c0_4 = arith.constant 0 : index
    %c0_5 = arith.constant 0 : index
    %9 = vector.load %arg4[%c0_4, %c0_5] : memref<8x128xf32, #tpu.memory_space<vmem>>, vector<8x128xf32>
    tpu.vector_store %arg4[%c0_4, %c0_5], %8 {strides = array<i32>} : memref<8x128xf32, #tpu.memory_space<vmem>>, vector<8x128xf32>,
    return
  }
  func.func @transform_0(%arg0: i32, %arg1: i32) -> (i32, i32) {
    %c0_i32 = arith.constant 0 : i32
    %c0_i32_0 = arith.constant 0 : i32
    return %arg0, %c0_i32 : i32, i32
  }
  func.func @transform_1(%arg0: i32, %arg1: i32) -> (i32, i32) {
    %c0_i32 = arith.constant 0 : i32
    %c0_i32_0 = arith.constant 0 : i32
    return %c0_i32, %arg1 : i32, i32
  }
  func.func @transform_2(%arg0: i32, %arg1: i32) -> (i32, i32) {
    %c0_i32 = arith.constant 0 : i32
    return %arg0, %arg1 : i32, i32
  }
}

</mosaic_0001>

<llo_original>
// kernel: tpu_custom_call.1
$region0: #{tpu_custom_call.1}
  #allocation0 [shape = 'u32[]', space=smem, size = 0x4, offset = 0x4, fixed_abs, tag = 'smem constant byte address 0x4 - core index']
  #allocation1 [shape = 'u32[144,128]{1,0:T(1,128)}', space=vmem, size = 0x12000, scoped, tag = 'internal scratch']
  %s0 = inlined_call_operand.hbm [shape: f32[8,64], index: 0, kind: input, shape index: {}]
  %s1 = inlined_call_operand.hbm [shape: bf16[64,256], index: 1, kind: input, shape index: {}]
  %s2 = inlined_call_operand.hbm [shape: f32[8,256], index: 2, kind: output, shape index: {}]
  %s3 = sld [smem:[#allocation0]]
  $region49: #{tpu_custom_call.1} parent=0
    _
  %s5 = ssub.s32 1, %s3
  %s6 = scalar_select 0, %s5, %s3
  $region1: #{tpu_custom_call.1} parent=0
    #allocation2 [shape = 'u8[4096]{0}', space=vmem, size = 0x1000, scoped, tag = 'input window, operand 0, single buffered']
    #allocation3 [shape = 's32[2]{0}', space=sflag, size = 0x8, scoped, tag = 'scoped memory for tpu_custom_call.1']
    #allocation4 [shape = 's32[2]{0}', space=sflag, size = 0x8, scoped, tag = 'scoped memory for tpu_custom_call.1']
    #allocation5 [shape = 'u8[32768]{0}', space=vmem, size = 0x8000, scoped, tag = 'input window, operand 1']
    #allocation6 [shape = 's32[2]{0}', space=sflag, size = 0x8, scoped, tag = 'scoped memory for tpu_custom_call.1']
    #allocation7 [shape = 'u8[8192]{0}', space=vmem, size = 0x2000, scoped, tag = 'output window, operand 0']
    %7 = vsyncpa [#allocation3], 0
    %8 = vsyncpa [#allocation6], 0
    %s9 = scalar_lea.sflag [#allocation6], 1
    %10 = vsyncpa %s9, 0
    %11 = vsyncpa [#allocation4], 0
    %s12 = scalar_lea.sflag [#allocation4], 1
    %13 = vsyncpa %s12, 0
    loop: start=0, step=1, limit=4
    $region2: #{tpu_custom_call.1} parent=1 // loop_pre_header
      _
    $region3: #{tpu_custom_call.1} parent=1 // loop_header
      %s15 = sphi 0, %s19
      %p16 = scmp.ge.s32.totalorder %s15, 4
      %s22 = sphi 0, %s34
      %s23 = sphi 0, %s30
      %s24 = sphi 0, %s22
      %s25 = sphi 0, %s23
      %s26 = sphi 0, %s24
      %s27 = sphi 0, %s25
      %s37 = sphi 0, %s39
      %s40 = sphi 0, %s37
      %s41 = sphi 0, %s40
      %s57 = sphi 0, %s41
      %s63 = sphi 0, %s65
      %s66 = sphi 0, %s63
      %s67 = sphi 0, %s66
      %s83 = sphi 0, %s67
      %s91 = sphi 0, %s93
      %s94 = sphi 0, %s91
      %s95 = sphi 0, %s94
      %s111 = sphi 0, %s95
    $region4: #{tpu_custom_call.1} parent=1 // loop_header_branch
      %18 = sbr.rel (%p16) target = $region8
    $region5: #{tpu_custom_call.1} parent=1 // loop_body
      %s20 = ssub.s32 %s15, 1
      %s21 = ssub.s32 %s15, 2
      %s28 = sadd.s32 1, %s23
      %p29 = scmp.ge.s32.totalorder %s28, 2
      %s30 = scalar_select %p29, 0, %s28
      %s31 = sadd.s32 1, %s22
      %s32 = scalar_select %p29, %s31, %s22
      %p33 = scmp.ge.s32.totalorder %s32, 1
      %s34 = scalar_select %p33, 0, %s32
      %s35 = ssub.s32 %s22, %s34
      %p36 = scmp.eq.s32.totalorder %s35, 0
      %s38 = sadd.s32 %s37, 1
      %s39 = scalar_select %p36, %s37, %s38
      %p42 = pneg %p36
      %p43 = scmp.eq.s32.totalorder %s15, 1
      %p44 = por %p42, %p43
      %p45 = scmp.ne.s32.totalorder %s37, %s40
      %p46 = scmp.eq.s32.totalorder %s15, 0
      %p47 = por %p45, %p46
      %p48 = scmp.ne.s32.totalorder %s37, %s40
      %p49 = scmp.eq.s32.totalorder %s20, 1
      %p50 = por %p48, %p49
      %p51 = scmp.ne.s32.totalorder %s40, %s41
      %p52 = scmp.eq.s32.totalorder %s20, 0
      %p53 = por %p51, %p52
      %p54 = scmp.ne.s32.totalorder %s40, %s41
      %p55 = scmp.eq.s32.totalorder %s21, 1
      %p56 = por %p54, %p55
      %p58 = scmp.ne.s32.totalorder %s41, %s57
      %p59 = scmp.eq.s32.totalorder %s21, 0
      %p60 = por %p58, %p59
      %s61 = ssub.s32 %s23, %s30
      %p62 = scmp.eq.s32.totalorder %s61, 0
      %s64 = sadd.s32 %s63, 1
      %s65 = scalar_select %p62, %s63, %s64
      %p68 = pneg %p62
      %p69 = scmp.eq.s32.totalorder %s15, 1
      %p70 = por %p68, %p69
      %p71 = scmp.ne.s32.totalorder %s63, %s66
      %p72 = scmp.eq.s32.totalorder %s15, 0
      %p73 = por %p71, %p72
      %p74 = scmp.ne.s32.totalorder %s63, %s66
      %p75 = scmp.eq.s32.totalorder %s20, 1
      %p76 = por %p74, %p75
      %p77 = scmp.ne.s32.totalorder %s66, %s67
      %p78 = scmp.eq.s32.totalorder %s20, 0
      %p79 = por %p77, %p78
      %p80 = scmp.ne.s32.totalorder %s66, %s67
      %p81 = scmp.eq.s32.totalorder %s21, 1
      %p82 = por %p80, %p81
      %p84 = scmp.ne.s32.totalorder %s67, %s83
      %p85 = scmp.eq.s32.totalorder %s21, 0
      %p86 = por %p84, %p85
      %s87 = ssub.s32 %s22, %s34
      %s88 = ssub.s32 %s23, %s30
      %s89 = sor.u32 %s87, %s88
      %p90 = scmp.eq.s32.totalorder %s89, 0
      %s92 = sadd.s32 %s91, 1
      %s93 = scalar_select %p90, %s91, %s92
      %p96 = pneg %p90
      %p97 = scmp.eq.s32.totalorder %s15, 1
      %p98 = por %p96, %p97
      %p99 = scmp.ne.s32.totalorder %s91, %s94
      %p100 = scmp.eq.s32.totalorder %s15, 0
      %p101 = por %p99, %p100
      %p102 = scmp.ne.s32.totalorder %s91, %s94
      %p103 = scmp.eq.s32.totalorder %s20, 1
      %p104 = por %p102, %p103
      %p105 = scmp.ne.s32.totalorder %s94, %s95
      %p106 = scmp.eq.s32.totalorder %s20, 0
      %p107 = por %p105, %p106
      %p108 = scmp.ne.s32.totalorder %s94, %s95
      %p109 = scmp.eq.s32.totalorder %s21, 1
      %p110 = por %p108, %p109
      %p112 = scmp.ne.s32.totalorder %s95, %s111
      %p113 = scmp.eq.s32.totalorder %s21, 0
      %p114 = por %p112, %p113
      %p115 = scmp.le.s32.totalorder 1, %s15
      %p116 = scmp.lt.s32.totalorder %s15, 3
      %p117 = pnand %p115, %p116
      %p118 = pneg %p117
      // Predicated region
      $region9: #{tpu_custom_call.1} parent=5 // pred_check
        _
      $region10: #{tpu_custom_call.1} parent=5 // pred_check_branch
        %120 = sbr.rel (%p117) target = $region12
      $region11: #{tpu_custom_call.1} parent=5 // pred_region
        %s121 = ssub.s32 %s15, 1
        // Predicated region
        $region13: #{tpu_custom_call.1} parent=11 // pred_check
          %p122 = pneg %p53
        $region14: #{tpu_custom_call.1} parent=11 // pred_check_branch
          %124 = sbr.rel (%p122) target = $region16
        $region15: #{tpu_custom_call.1} parent=11 // pred_region
          %s126 = ssub.s32 128, 128
          %127 = vsyncadd [#allocation3], %s126
          %s128 = smul.addr %s24, 128
          %s129 = scalar_lea.hbm %s0, %s128
          %s131 = sshll.u32 [#allocation2], 4
          %s132 = int_to_ptr.vmem [resolvable:$true] %s131
          %134 = dma.hbm_to_vmem [thread:$0]  %s129, 128, %s132, [#allocation3]
        $region16: #{tpu_custom_call.1} parent=11 // pred_fallthru
          _
      $region12: #{tpu_custom_call.1} parent=5 // pred_fallthru
        _
      %p135 = scmp.lt.s32.totalorder %s15, 2
      // Predicated region
      $region17: #{tpu_custom_call.1} parent=5 // pred_check
        %p136 = pneg %p135
      $region18: #{tpu_custom_call.1} parent=5 // pred_check_branch
        %138 = sbr.rel (%p136) target = $region20
      $region19: #{tpu_custom_call.1} parent=5 // pred_region
        // Predicated region
        $region21: #{tpu_custom_call.1} parent=19 // pred_check
          %p139 = pneg %p73
        $region22: #{tpu_custom_call.1} parent=19 // pred_check_branch
          %141 = sbr.rel (%p139) target = $region24
        $region23: #{tpu_custom_call.1} parent=19 // pred_region
          %s142 = sand.u32 %s63, 1
          %s143 = scalar_lea.sflag [#allocation6], %s142
          %s144 = sand.u32 %s63, 1
          %s145 = smul.addr %s144, 32
          %s146 = scalar_lea.vmem [#allocation5], %s145
          %s148 = ssub.s32 512, 512
          %149 = vsyncadd %s143, %s148
          %s150 = smul.addr %s23, 64
          %s151 = scalar_lea.hbm %s1, %s150
          %s152 = sshll.u32 %s146, 4
          %s153 = int_to_ptr.vmem [resolvable:$true] %s152
          %158 = dma.hbm_to_vmem [thread:$0]  %s151, 512, %s153, %s143, 128, 64, 4
        $region24: #{tpu_custom_call.1} parent=19 // pred_fallthru
          _
      $region20: #{tpu_custom_call.1} parent=5 // pred_fallthru
        _
      %p159 = scmp.le.s32.totalorder 1, %s15
      %p160 = scmp.lt.s32.totalorder %s15, 3
      %p161 = pnand %p159, %p160
      %p162 = pneg %p161
      // Predicated region
      $region25: #{tpu_custom_call.1} parent=5 // pred_check
        _
      $region26: #{tpu_custom_call.1} parent=5 // pred_check_branch
        %164 = sbr.rel (%p161) target = $region28
      $region27: #{tpu_custom_call.1} parent=5 // pred_region
        %s165 = ssub.s32 %s15, 1
        // Predicated region
        $region29: #{tpu_custom_call.1} parent=27 // pred_check
          %p166 = pneg %p53
        $region30: #{tpu_custom_call.1} parent=27 // pred_check_branch
          %168 = sbr.rel (%p166) target = $region32
        $region31: #{tpu_custom_call.1} parent=27 // pred_region
          %169 = dma.done [#allocation3], 128
        $region32: #{tpu_custom_call.1} parent=27 // pred_fallthru
          _
        %s170 = sand.u32 %s66, 1
        %s171 = scalar_lea.sflag [#allocation6], %s170
        %s172 = sand.u32 %s66, 1
        %s173 = smul.addr %s172, 32
        %s174 = scalar_lea.vmem [#allocation5], %s173
        // Predicated region
        $region33: #{tpu_custom_call.1} parent=27 // pred_check
          %p175 = pneg %p79
        $region34: #{tpu_custom_call.1} parent=27 // pred_check_branch
          %177 = sbr.rel (%p175) target = $region36
        $region35: #{tpu_custom_call.1} parent=27 // pred_region
          %178 = dma.done %s171, 512
        $region36: #{tpu_custom_call.1} parent=27 // pred_fallthru
          _
        %p179 = pneg %p53
        %p180 = pneg %p50
        %s181 = sand.u32 %s66, 1
        %s182 = scalar_lea.sflag [#allocation6], %s181
        %s183 = sand.u32 %s66, 1
        %s184 = smul.addr %s183, 32
        %s185 = scalar_lea.vmem [#allocation5], %s184
        %p186 = pneg %p79
        %p187 = pneg %p76
        %p188 = pneg %p107
        %p189 = pneg %p104
        %s190 = sand.u32 %s94, 1
        %s191 = scalar_lea.sflag [#allocation4], %s190
        %s192 = sand.u32 %s94, 1
        %s193 = smul.addr %s192, 8
        %s194 = scalar_lea.vmem [#allocation7], %s193
        %v196 = vld [vmem:[#allocation2] sm:$0xff]
        %v197 = vpack.c.bf16 %v196, %v196
        %v198 = vld [vmem:[%s174] sm:$0xf]
        %v199 = vld [vmem:[%s174 + $0x4] sm:$0xf]
        %v200 = vld [vmem:[%s174 + $0x8] sm:$0xf]
        %v201 = vld [vmem:[%s174 + $0xc] sm:$0xf]
        %v202 = vld [vmem:[%s174 + $0x10] sm:$0xf]
        %v203 = vld [vmem:[%s174 + $0x14] sm:$0xf]
        %v204 = vld [vmem:[%s174 + $0x18] sm:$0xf]
        %v205 = vld [vmem:[%s174 + $0x1c] sm:$0xf]
        %v214 = vunpack.c.l.b16 %v198
        %v215 = vunpack.c.l.b16 %v199
        %v216 = vunpack.c.l.b16 %v200
        %v217 = vunpack.c.l.b16 %v201
        %v218 = vunpack.c.l.b16 %v202
        %v219 = vunpack.c.l.b16 %v203
        %v220 = vunpack.c.l.b16 %v204
        %v221 = vunpack.c.l.b16 %v205
        %v222 = vpack.c.b16 %v215, %v214
        %v223 = vpack.c.b16 %v217, %v216
        %v224 = vpack.c.b16 %v219, %v218
        %v225 = vpack.c.b16 %v221, %v220
        %vm230 = vcmask 523264
        %v232 = vsel %vm230, %v197, 0
        %234 = vmatprep.subr.bf16.mxu0 0
        %235 = vmatpush1.bf16.msra.mxu0 %v222
        %236 = vmatprep.subr.bf16.mxu0 0
        %237 = vmatpush1.bf16.msra.mxu0 %v223
        %238 = vmatprep.subr.bf16.mxu0 0
        %239 = vmatpush1.bf16.msra.mxu0 %v224
        %240 = vmatprep.subr.bf16.mxu0 0
        %241 = vmatpush1.bf16.msra.mxu0 %v225
        %242 = vmatprep.subr.bf16.mxu0 0
        %243 = vmatpush1.bf16.msra.mxu0 0
        %244 = vmatprep.subr.bf16.mxu0 0
        %245 = vmatpush1.bf16.msra.mxu0 0
        %246 = vmatprep.subr.bf16.mxu0 0
        %247 = vmatpush1.bf16.msra.mxu0 0
        %248 = vmatprep.subr.bf16.mxu0 0
        %249 = vmatpush1.bf16.msra.mxu0 0
        %250 = vmatprep.subr.bf16.mxu0 0
        %251 = vmatpush1.bf16.msra.mxu0 0
        %252 = vmatprep.subr.bf16.mxu0 0
        %253 = vmatpush1.bf16.msra.mxu0 0
        %254 = vmatprep.subr.bf16.mxu0 0
        %255 = vmatpush1.bf16.msra.mxu0 0
        %256 = vmatprep.subr.bf16.mxu0 0
        %257 = vmatpush1.bf16.msra.mxu0 0
        %258 = vmatprep.subr.bf16.mxu0 0
        %259 = vmatpush1.bf16.msra.mxu0 0
        %260 = vmatprep.subr.bf16.mxu0 0
        %261 = vmatpush1.bf16.msra.mxu0 0
        %262 = vmatprep.subr.bf16.mxu0 0
        %263 = vmatpush1.bf16.msra.mxu0 0
        %264 = vmatprep.subr.bf16.mxu0 0
        %265 = vmatpush1.bf16.msra.mxu0 0
        %266 = vmatprep.mubr.bf16.mxu0 0
        %267 = vmatmul.mubr.bf16.gmra.mrb[0].mxu0 %v232
        %v268 = vpop.f32.mrb[0].mxu0
        %v269 = vadd.f32 0.0, %v268
        %v270 = vpop.f32.mrb[0].mxu0
        %v271 = vpop.f32.mrb[0].mxu0
        %v272 = vpop.f32.mrb[0].mxu0
        %273 = vdwg.mxu0
        %v274 = vxor.u32 %v269, 2147483648
        %v275 = vmul.f32 %v274, 1.442695
        %v276 = vpow.pop %v275
        %v277 = vadd.f32 %v276, 1.0
        %v278 = vrcp.pop %v277
        %v279 = vmul.f32 1.0, %v278
        %280 = vst [vmem:[%s194] sm:$0xff] %v279
        %s281 = sand.u32 %s94, 1
        %s282 = scalar_lea.sflag [#allocation4], %s281
        %s283 = sand.u32 %s94, 1
        %s284 = smul.addr %s283, 8
        %s285 = scalar_lea.vmem [#allocation7], %s284
        // Predicated region
        $region37: #{tpu_custom_call.1} parent=27 // pred_check
          %p286 = pneg %p104
        $region38: #{tpu_custom_call.1} parent=27 // pred_check_branch
          %288 = sbr.rel (%p286) target = $region40
        $region39: #{tpu_custom_call.1} parent=27 // pred_region
          %s290 = ssub.s32 128, 128
          %291 = vsyncadd %s282, %s290
          %s292 = smul.addr %s24, 2
          %s293 = sadd.s32 %s25, %s292
          %s294 = smul.addr %s293, 128
          %s295 = scalar_lea.hbm %s2, %s294
          %s297 = sshll.u32 %s285, 4
          %s298 = int_to_ptr.vmem [resolvable:$true] %s297
          %300 = dma.vmem_to_hbm [thread:$0]  %s298, 128, %s295, %s282
        $region40: #{tpu_custom_call.1} parent=27 // pred_fallthru
          _
      $region28: #{tpu_custom_call.1} parent=5 // pred_fallthru
        _
      %p301 = scmp.le.s32.totalorder 2, %s15
      // Predicated region
      $region41: #{tpu_custom_call.1} parent=5 // pred_check
        %p302 = pneg %p301
      $region42: #{tpu_custom_call.1} parent=5 // pred_check_branch
        %304 = sbr.rel (%p302) target = $region44
      $region43: #{tpu_custom_call.1} parent=5 // pred_region
        %s305 = ssub.s32 %s15, 2
        // Predicated region
        $region45: #{tpu_custom_call.1} parent=43 // pred_check
          %p306 = pneg %p110
        $region46: #{tpu_custom_call.1} parent=43 // pred_check_branch
          %308 = sbr.rel (%p306) target = $region48
        $region47: #{tpu_custom_call.1} parent=43 // pred_region
          %s309 = sand.u32 %s95, 1
          %s310 = scalar_lea.sflag [#allocation4], %s309
          %s311 = sand.u32 %s95, 1
          %s312 = smul.addr %s311, 8
          %s313 = scalar_lea.vmem [#allocation7], %s312
          %314 = dma.done %s310, 128
        $region48: #{tpu_custom_call.1} parent=43 // pred_fallthru
          _
      $region44: #{tpu_custom_call.1} parent=5 // pred_fallthru
        _
    $region6: #{tpu_custom_call.1} parent=1 // loop_footer
      %s19 = sadd.s32 1, %s15
    $region7: #{tpu_custom_call.1} parent=1 // loop_footer_branch
      %14 = sbr.rel target = $region3
    $region8: #{tpu_custom_call.1} parent=1 // loop_exit
      _
    %315 = vsyncpa [#allocation3], 1
    %s316 = scalar_lea.sflag [#allocation3], 1
    %317 = vsyncpa %s316, 1
    %318 = vsyncpa [#allocation6], 1
    %s319 = scalar_lea.sflag [#allocation6], 1
    %320 = vsyncpa %s319, 1
    %321 = vsyncpa [#allocation4], 1
    %s322 = scalar_lea.sflag [#allocation4], 1
    %323 = vsyncpa %s322, 1

</llo_original>
